<compile_context>
chip_gen: v7x
topology: tpu7x:2x2x1
jax: 0.10.0
libtpu: 0.0.40
codegen_flags: <defaults>
</compile_context>

<pallas_src>
import functools

import jax
import jax.numpy as jnp
from jax import lax
from jax.experimental import pallas as pl
from jax.experimental.pallas import tpu as pltpu

LN_EPS = 1e-5                       # torch.nn.LayerNorm default
_INV_SQRT2 = 0.7071067811865476     # 1/sqrt(2) for exact (erf) GELU


def _round_up(x, m):
    return (x + m - 1) // m * m


def _supports_buffered_1():
    # One-time feature probe: does this JAX build accept pipeline_mode=pl.Buffered(1)?
    try:
        pl.BlockSpec((8, 128), lambda i: (0, 0), pipeline_mode=pl.Buffered(1))
        return True
    except (TypeError, AttributeError):
        return False


_HAS_BUFFERED_1 = _supports_buffered_1()


@functools.lru_cache(maxsize=1)
def _vmem_capacity_bytes():
    # Trace-time chip query; conservative (v7x per-TC) fallback if unavailable.
    try:
        return int(pltpu.get_tpu_info().vmem_capacity_bytes)
    except (AttributeError, RuntimeError, ValueError):
        return 64 << 20


def _mlp_proj_kernel(x_ref, pin_ref, w1_ref, w2_ref, pout_ref, o_ref):
    # Packed per-feature parameter rows (kept f32).
    ln1_g = pin_ref[0:1, :]
    ln1_b = pin_ref[1:2, :]
    b1 = pin_ref[2:3, :]
    b2 = pout_ref[0:1, :]
    ln2_g = pout_ref[1:2, :]
    ln2_b = pout_ref[2:3, :]

    # ---- LayerNorm(in_dim): single-pass stats (mu, E[x^2]) in f32 ----
    x = x_ref[...].astype(jnp.float32)
    mu = jnp.mean(x, axis=-1, keepdims=True)
    m2 = jnp.mean(x * x, axis=-1, keepdims=True)
    var = jnp.maximum(m2 - mu * mu, 0.0)
    h = (x - mu) * lax.rsqrt(var + LN_EPS)
    h = h * ln1_g + ln1_b

    # ---- Linear(in_dim, in_dim): bf16 operands on the MXU, f32 accumulate ----
    h = jnp.dot(h.astype(jnp.bfloat16), w1_ref[...],
                preferred_element_type=jnp.float32) + b1

    # ---- exact (erf) GELU in f32, matching torch.nn.GELU(approximate='none') ----
    # (tanh-approx GELU would move the transcendental onto the EUP slot, but changes
    #  numerics vs. the PyTorch module, so it is not used here.)
    h = 0.5 * h * (1.0 + lax.erf(h * _INV_SQRT2))

    # ---- Linear(in_dim, out_dim): bf16 operands on the MXU, f32 accumulate ----
    h = jnp.dot(h.astype(jnp.bfloat16), w2_ref[...],
                preferred_element_type=jnp.float32) + b2

    # ---- LayerNorm(out_dim): single-pass stats in f32 ----
    mu2 = jnp.mean(h, axis=-1, keepdims=True)
    m22 = jnp.mean(h * h, axis=-1, keepdims=True)
    var2 = jnp.maximum(m22 - mu2 * mu2, 0.0)
    h = (h - mu2) * lax.rsqrt(var2 + LN_EPS)
    h = h * ln2_g + ln2_b

    o_ref[...] = h.astype(o_ref.dtype)


@functools.partial(jax.jit, static_argnames=("tm",))
def _mlp_proj_impl(image_embeds, params, *, tm):
    ln1_g, ln1_b, w1, b1, w2, b2, ln2_g, ln2_b = params
    B, L, in_dim = image_embeds.shape
    out_dim = w2.shape[1]
    N = B * L

    # Row tile: multiple of 16 (legal sublane layout for both f32 and bf16 inputs),
    # capped at round_up(N, 16).  Default 512 amortizes per-grid-step overhead.
    tm_eff = max(16, _round_up(min(int(tm), _round_up(N, 16)), 16))
    # If everything would fit in a single tile but there is enough work, split it so the
    # "parallel" row axis has >= 2 steps and v7x can shard them across its two TCs.
    if tm_eff >= N and N > 16:
        tm_eff = max(16, _round_up((N + 1) // 2, 16))
    grid_m = pl.cdiv(N, tm_eff)

    # No wrapper-side padding: Pallas handles the partial last row block (unspecified
    # tail rows are row-contained and their output writes are masked), saving an extra
    # HBM read+write pass over the input for ragged N.
    x2d = image_embeds.reshape(N, in_dim)

    # Matmul operands in bf16 (native MXU dtype on v5e/v6e/v7x, halves weight DMA bytes).
    # In production the weights would already live in HBM as bf16; the cast is free then.
    w1_bf = w1.astype(jnp.bfloat16)
    w2_bf = w2.astype(jnp.bfloat16)
    # Pack the six per-feature vectors into two (3, dim) f32 blocks.
    pin = jnp.stack([ln1_g, ln1_b, b1]).astype(jnp.float32)     # (3, in_dim)
    pout = jnp.stack([b2, ln2_g, ln2_b]).astype(jnp.float32)    # (3, out_dim)

    def const_spec(shape):
        # Constant blocks (weights / packed params) never change across the grid; with a
        # constant index_map they are fetched once.  Buffered(1) additionally halves
        # their resident VMEM footprint where the JAX build supports pipeline_mode.
        if _HAS_BUFFERED_1:
            return pl.BlockSpec(shape, lambda i: (0, 0), pipeline_mode=pl.Buffered(1))
        return pl.BlockSpec(shape, lambda i: (0, 0))

    # VMEM budget: bf16 weights (x pipeline buffers) + packed param rows + x/out tiles
    # (double-buffered) + f32 in-kernel temporaries, with headroom, clamped to the
    # actual chip VMEM capacity (64 MiB/TC on v7x, 128 MiB on v5e/v6e) minus a reserve.
    weight_bufs = 1 if _HAS_BUFFERED_1 else 2
    itemsize = image_embeds.dtype.itemsize
    vmem_bytes = weight_bufs * 2 * (in_dim * in_dim + in_dim * out_dim)   # W1, W2 (bf16)
    vmem_bytes += weight_bufs * 4 * 3 * (in_dim + out_dim)                # packed params
    vmem_bytes += 2 * tm_eff * in_dim * itemsize                          # x tiles
    vmem_bytes += 2 * tm_eff * out_dim * itemsize                         # out tiles
    vmem_bytes += 6 * tm_eff * max(in_dim, out_dim) * 4                   # f32 temporaries
    vmem_cap = _vmem_capacity_bytes()
    vmem_limit = int(min(max(vmem_bytes * 5 // 4 + (4 << 20), 32 << 20),
                         max(vmem_cap - (6 << 20), 16 << 20)))
    # TODO(synk): when the resident bf16 W1+W2 no longer fit the per-TC VMEM budget
    # (very large in_dim/out_dim on v7x's 64 MiB), switch to a weight-streaming path:
    # keep W1/W2 in memory_space=pl.ANY and stream K-slabs with pltpu.emit_pipeline
    # into f32 accumulators instead of keeping both full weights resident.

    # NOTE: the output keeps the input dtype.  If the surrounding model already produces
    # and consumes bf16 activations, feeding bf16 in/out halves HBM traffic on the
    # mem-bound v6e/v7x shapes with zero extra wrapper casts.
    out2d = pl.pallas_call(
        _mlp_proj_kernel,
        out_shape=jax.ShapeDtypeStruct((N, out_dim), image_embeds.dtype),
        grid_spec=pltpu.PrefetchScalarGridSpec(
            num_scalar_prefetch=0,
            grid=(grid_m,),
            in_specs=[
                pl.BlockSpec((tm_eff, in_dim), lambda i: (i, 0)),  # x row tile
                const_spec((3, in_dim)),         # [ln1_gamma, ln1_beta, b1]
                const_spec((in_dim, in_dim)),    # W1 (bf16)
                const_spec((in_dim, out_dim)),   # W2 (bf16)
                const_spec((3, out_dim)),        # [b2, ln2_gamma, ln2_beta]
            ],
            out_specs=pl.BlockSpec((tm_eff, out_dim), lambda i: (i, 0)),
        ),
        compiler_params=pltpu.CompilerParams(
            dimension_semantics=("parallel",),
            vmem_limit_bytes=vmem_limit),
    )(x2d, pin, w1_bf, w2_bf, pout)

    return out2d.reshape(B, L, out_dim)


def mlp_proj(image_embeds, params, *, tm=512):
    """image_embeds: (B, L, in_dim). Returns (B, L, out_dim)."""
    return _mlp_proj_impl(image_embeds, params, tm=tm)


def init_params(key, in_dim, out_dim, dtype=jnp.float32):
    """Deterministic synthetic parameters with the shapes of MLPProj.__init__."""
    ks = jax.random.split(key, 6)
    ln1_g = 1.0 + 0.1 * jax.random.normal(ks[0], (in_dim,), dtype)
    ln1_b = 0.1 * jax.random.normal(ks[1], (in_dim,), dtype)
    # Linear weights stored (in, out) so the kernel computes x @ W (== x @ W_torch.T).
    w1 = jax.random.normal(ks[2], (in_dim, in_dim), dtype) / jnp.sqrt(in_dim)
    b1 = 0.01 * jax.random.normal(ks[3], (in_dim,), dtype)
    w2 = jax.random.normal(ks[4], (in_dim, out_dim), dtype) / jnp.sqrt(in_dim)
    b2 = 0.01 * jax.random.normal(ks[5], (out_dim,), dtype)
    ln2_g = jnp.ones((out_dim,), dtype)
    ln2_b = jnp.zeros((out_dim,), dtype)
    return (ln1_g, ln1_b, w1, b1, w2, b2, ln2_g, ln2_b)


def reference(image_embeds, params, matmul_dtype=jnp.float32):
    """Pure-JAX reference matching the PyTorch forward semantics.

    matmul_dtype lets us also build the 'bf16 matmul operands, f32 accumulate'
    reference that mirrors exactly what the kernel computes on the MXU.
    """
    ln1_g, ln1_b, w1, b1, w2, b2, ln2_g, ln2_b = params
    x = image_embeds.astype(jnp.float32)

    def ln(h, g, b):
        mu = jnp.mean(h, -1, keepdims=True)
        var = jnp.mean(jnp.square(h - mu), -1, keepdims=True)
        return (h - mu) * lax.rsqrt(var + LN_EPS) * g + b

    def mm(a, w):
        return jnp.dot(a.astype(matmul_dtype), w.astype(matmul_dtype),
                       preferred_element_type=jnp.float32)

    h = ln(x, ln1_g, ln1_b)
    h = mm(h, w1) + b1
    h = 0.5 * h * (1.0 + lax.erf(h * _INV_SQRT2))
    h = mm(h, w2) + b2
    h = ln(h, ln2_g, ln2_b)
    return h.astype(image_embeds.dtype)


if __name__ == "__main__":
    # Small but lane-dense dims (multiples of 128 -> unmasked vector stores).
    in_dim, out_dim = 256, 128

    key = jax.random.PRNGKey(0)
    k_x1, k_x2, k_x3, k_p = jax.random.split(key, 4)
    params = init_params(k_p, in_dim, out_dim)

    # Case 1: tiny token count (single 16-row tile).
    x1 = jax.random.normal(k_x1, (2, 8, in_dim), jnp.float32)
    out1 = jax.block_until_ready(mlp_proj(x1, params))
    assert out1.shape == (2, 8, out_dim), out1.shape

    # Case 2: ragged token count that fits one tile -> split into 2 tiles (megacore path)
    # with a partial last block (no wrapper-side padding).
    x2 = jax.random.normal(k_x2, (3, 100, in_dim), jnp.float32)
    out2 = jax.block_until_ready(mlp_proj(x2, params))
    assert out2.shape == (3, 100, out_dim), out2.shape

    # Case 3: larger ragged token count exercising the default tm=512 multi-step grid.
    x3 = jax.random.normal(k_x3, (4, 300, in_dim), jnp.float32)
    out3 = jax.block_until_ready(mlp_proj(x3, params))
    assert out3.shape == (4, 300, out_dim), out3.shape

    for x, out in ((x1, out1), (x2, out2), (x3, out3)):
        # Tight check vs. the same math (bf16 MXU operands, f32 accumulate) in XLA.
        ref_bf16 = reference(x, params, matmul_dtype=jnp.bfloat16)
        assert jnp.allclose(out, ref_bf16, atol=5e-3, rtol=5e-3), \
            float(jnp.max(jnp.abs(out - ref_bf16)))
        # Fidelity check vs. the full-f32 PyTorch-equivalent math (bf16 rounding budget).
        ref_f32 = reference(x, params, matmul_dtype=jnp.float32)
        assert jnp.allclose(out, ref_f32, atol=5e-2, rtol=5e-2), \
            float(jnp.max(jnp.abs(out - ref_f32)))

    print("KERNEL_OK")
</pallas_src>

<mosaic_0001>
module attributes {stable_mosaic.version = 11 : i64} {
  func.func @_mlp_proj_kernel(%arg0: i32, %arg1: memref<16x256xf32, #tpu.memory_space<vmem>>, %arg2: memref<3x256xf32, #tpu.memory_space<vmem>>, %arg3: memref<256x256xbf16, #tpu.memory_space<vmem>>, %arg4: memref<256x128xbf16, #tpu.memory_space<vmem>>, %arg5: memref<3x128xf32, #tpu.memory_space<vmem>>, %arg6: memref<16x128xf32, #tpu.memory_space<vmem>>) attributes {dimension_semantics = [#tpu.dimension_semantics<parallel>], iteration_bounds = array<i64: 1>, scalar_prefetch = 0 : i64, scratch_operands = 0 : i64, tpu.core_type = #tpu.core_type<tc>, window_params = [{transform_indices = @transform_0, window_bounds = array<i64: 16, 256>}, {pipeline_mode = #tpu.pipeline_mode<synchronous>, transform_indices = @transform_1, window_bounds = array<i64: 3, 256>}, {pipeline_mode = #tpu.pipeline_mode<synchronous>, transform_indices = @transform_2, window_bounds = array<i64: 256, 256>}, {pipeline_mode = #tpu.pipeline_mode<synchronous>, transform_indices = @transform_3, window_bounds = array<i64: 256, 128>}, {pipeline_mode = #tpu.pipeline_mode<synchronous>, transform_indices = @transform_4, window_bounds = array<i64: 3, 128>}, {transform_indices = @transform_5, window_bounds = array<i64: 16, 128>}]} {
    %c0 = arith.constant 0 : index
    %c0_0 = arith.constant 0 : index
    %0 = vector.load %arg2[%c0, %c0_0] : memref<3x256xf32, #tpu.memory_space<vmem>>, vector<1x256xf32>
    %c1 = arith.constant 1 : index
    %c0_1 = arith.constant 0 : index
    %1 = vector.load %arg2[%c1, %c0_1] : memref<3x256xf32, #tpu.memory_space<vmem>>, vector<1x256xf32>
    %c2 = arith.constant 2 : index
    %c0_2 = arith.constant 0 : index
    %2 = vector.load %arg2[%c2, %c0_2] : memref<3x256xf32, #tpu.memory_space<vmem>>, vector<1x256xf32>
    %c0_3 = arith.constant 0 : index
    %c0_4 = arith.constant 0 : index
    %3 = vector.load %arg5[%c0_3, %c0_4] : memref<3x128xf32, #tpu.memory_space<vmem>>, vector<1x128xf32>
    %c1_5 = arith.constant 1 : index
    %c0_6 = arith.constant 0 : index
    %4 = vector.load %arg5[%c1_5, %c0_6] : memref<3x128xf32, #tpu.memory_space<vmem>>, vector<1x128xf32>
    %c2_7 = arith.constant 2 : index
    %c0_8 = arith.constant 0 : index
    %5 = vector.load %arg5[%c2_7, %c0_8] : memref<3x128xf32, #tpu.memory_space<vmem>>, vector<1x128xf32>
    %c0_9 = arith.constant 0 : index
    %c0_10 = arith.constant 0 : index
    %6 = vector.load %arg1[%c0_9, %c0_10] : memref<16x256xf32, #tpu.memory_space<vmem>>, vector<16x256xf32>
    %cst = arith.constant dense<0.000000e+00> : vector<16xf32>
    %7 = vector.multi_reduction <add>, %6, %cst [1] : vector<16x256xf32> to vector<16xf32>
    %8 = vector.shape_cast %7 : vector<16xf32> to vector<16x1xf32>
    %cst_11 = arith.constant 2.560000e+02 : f32
    %9 = vector.broadcast %cst_11 : f32 to vector<16x1xf32>
    %10 = arith.divf %8, %9 : vector<16x1xf32>
    %11 = arith.mulf %6, %6 : vector<16x256xf32>
    %cst_12 = arith.constant dense<0.000000e+00> : vector<16xf32>
    %12 = vector.multi_reduction <add>, %11, %cst_12 [1] : vector<16x256xf32> to vector<16xf32>
    %13 = vector.shape_cast %12 : vector<16xf32> to vector<16x1xf32>
    %cst_13 = arith.constant 2.560000e+02 : f32
    %14 = vector.broadcast %cst_13 : f32 to vector<16x1xf32>
    %15 = arith.divf %13, %14 : vector<16x1xf32>
    %16 = arith.mulf %10, %10 : vector<16x1xf32>
    %17 = arith.subf %15, %16 : vector<16x1xf32>
    %cst_14 = arith.constant 0.000000e+00 : f32
    %18 = vector.broadcast %cst_14 : f32 to vector<16x1xf32>
    %19 = arith.maximumf %17, %18 : vector<16x1xf32>
    %20 = vector.broadcast %10 : vector<16x1xf32> to vector<16x256xf32>
    %21 = arith.subf %6, %20 : vector<16x256xf32>
    %cst_15 = arith.constant 9.99999974E-6 : f32
    %22 = vector.broadcast %cst_15 : f32 to vector<16x1xf32>
    %23 = arith.addf %19, %22 : vector<16x1xf32>
    %24 = math.rsqrt %23 : vector<16x1xf32>
    %25 = vector.broadcast %24 : vector<16x1xf32> to vector<16x256xf32>
    %26 = arith.mulf %21, %25 : vector<16x256xf32>
    %27 = vector.broadcast %0 : vector<1x256xf32> to vector<16x256xf32>
    %28 = arith.mulf %26, %27 : vector<16x256xf32>
    %29 = vector.broadcast %1 : vector<1x256xf32> to vector<16x256xf32>
    %30 = arith.addf %28, %29 : vector<16x256xf32>
    %31 = arith.truncf %30 : vector<16x256xf32> to vector<16x256xbf16>
    %c0_16 = arith.constant 0 : index
    %c0_17 = arith.constant 0 : index
    %32 = vector.load %arg3[%c0_16, %c0_17] : memref<256x256xbf16, #tpu.memory_space<vmem>>, vector<256x256xbf16>
    %cst_18 = arith.constant dense<0.000000e+00> : vector<16x256xf32>
    %33 = tpu.matmul %31, %32, %cst_18 {dimension_numbers = #tpu.dot_dimension_numbers<[1], [0], [0], [1], [0, 0, 1, 1], [], []>} : vector<16x256xbf16>, vector<256x256xbf16>, vector<16x256xf32> -> vector<16x256xf32>
    %34 = vector.broadcast %2 : vector<1x256xf32> to vector<16x256xf32>
    %35 = arith.addf %33, %34 : vector<16x256xf32>
    %cst_19 = arith.constant 5.000000e-01 : f32
    %36 = vector.broadcast %cst_19 : f32 to vector<16x256xf32>
    %37 = arith.mulf %36, %35 : vector<16x256xf32>
    %cst_20 = arith.constant 0.707106769 : f32
    %38 = vector.broadcast %cst_20 : f32 to vector<16x256xf32>
    %39 = arith.mulf %35, %38 : vector<16x256xf32>
    %40 = math.erf %39 : vector<16x256xf32>
    %cst_21 = arith.constant 1.000000e+00 : f32
    %41 = vector.broadcast %cst_21 : f32 to vector<16x256xf32>
    %42 = arith.addf %41, %40 : vector<16x256xf32>
    %43 = arith.mulf %37, %42 : vector<16x256xf32>
    %44 = arith.truncf %43 : vector<16x256xf32> to vector<16x256xbf16>
    %c0_22 = arith.constant 0 : index
    %c0_23 = arith.constant 0 : index
    %45 = vector.load %arg4[%c0_22, %c0_23] : memref<256x128xbf16, #tpu.memory_space<vmem>>, vector<256x128xbf16>
    %cst_24 = arith.constant dense<0.000000e+00> : vector<16x128xf32>
    %46 = tpu.matmul %44, %45, %cst_24 {dimension_numbers = #tpu.dot_dimension_numbers<[1], [0], [0], [1], [0, 0, 1, 1], [], []>} : vector<16x256xbf16>, vector<256x128xbf16>, vector<16x128xf32> -> vector<16x128xf32>
    %47 = vector.broadcast %3 : vector<1x128xf32> to vector<16x128xf32>
    %48 = arith.addf %46, %47 : vector<16x128xf32>
    %cst_25 = arith.constant dense<0.000000e+00> : vector<16xf32>
    %49 = vector.multi_reduction <add>, %48, %cst_25 [1] : vector<16x128xf32> to vector<16xf32>
    %50 = vector.shape_cast %49 : vector<16xf32> to vector<16x1xf32>
    %cst_26 = arith.constant 1.280000e+02 : f32
    %51 = vector.broadcast %cst_26 : f32 to vector<16x1xf32>
    %52 = arith.divf %50, %51 : vector<16x1xf32>
    %53 = arith.mulf %48, %48 : vector<16x128xf32>
    %cst_27 = arith.constant dense<0.000000e+00> : vector<16xf32>
    %54 = vector.multi_reduction <add>, %53, %cst_27 [1] : vector<16x128xf32> to vector<16xf32>
    %55 = vector.shape_cast %54 : vector<16xf32> to vector<16x1xf32>
    %cst_28 = arith.constant 1.280000e+02 : f32
    %56 = vector.broadcast %cst_28 : f32 to vector<16x1xf32>
    %57 = arith.divf %55, %56 : vector<16x1xf32>
    %58 = arith.mulf %52, %52 : vector<16x1xf32>
    %59 = arith.subf %57, %58 : vector<16x1xf32>
    %cst_29 = arith.constant 0.000000e+00 : f32
    %60 = vector.broadcast %cst_29 : f32 to vector<16x1xf32>
    %61 = arith.maximumf %59, %60 : vector<16x1xf32>
    %62 = vector.broadcast %52 : vector<16x1xf32> to vector<16x128xf32>
    %63 = arith.subf %48, %62 : vector<16x128xf32>
    %cst_30 = arith.constant 9.99999974E-6 : f32
    %64 = vector.broadcast %cst_30 : f32 to vector<16x1xf32>
    %65 = arith.addf %61, %64 : vector<16x1xf32>
    %66 = math.rsqrt %65 : vector<16x1xf32>
    %67 = vector.broadcast %66 : vector<16x1xf32> to vector<16x128xf32>
    %68 = arith.mulf %63, %67 : vector<16x128xf32>
    %69 = vector.broadcast %4 : vector<1x128xf32> to vector<16x128xf32>
    %70 = arith.mulf %68, %69 : vector<16x128xf32>
    %71 = vector.broadcast %5 : vector<1x128xf32> to vector<16x128xf32>
    %72 = arith.addf %70, %71 : vector<16x128xf32>
    %c0_31 = arith.constant 0 : index
    %c0_32 = arith.constant 0 : index
    %73 = vector.load %arg6[%c0_31, %c0_32] : memref<16x128xf32, #tpu.memory_space<vmem>>, vector<16x128xf32>
    tpu.vector_store %arg6[%c0_31, %c0_32], %72 {strides = array<i32>} : memref<16x128xf32, #tpu.memory_space<vmem>>, vector<16x128xf32>,
    return
  }
  func.func @transform_0(%arg0: i32) -> (i32, i32) {
    %c0_i32 = arith.constant 0 : i32
    %c0_i32_0 = arith.constant 0 : i32
    return %arg0, %c0_i32 : i32, i32
  }
  func.func @transform_1(%arg0: i32) -> (i32, i32) {
    %c0_i32 = arith.constant 0 : i32
    %c0_i32_0 = arith.constant 0 : i32
    %c0_i32_1 = arith.constant 0 : i32
    return %c0_i32, %c0_i32_0 : i32, i32
  }
  func.func @transform_2(%arg0: i32) -> (i32, i32) {
    %c0_i32 = arith.constant 0 : i32
    %c0_i32_0 = arith.constant 0 : i32
    %c0_i32_1 = arith.constant 0 : i32
    return %c0_i32, %c0_i32_0 : i32, i32
  }
  func.func @transform_3(%arg0: i32) -> (i32, i32) {
    %c0_i32 = arith.constant 0 : i32
    %c0_i32_0 = arith.constant 0 : i32
    %c0_i32_1 = arith.constant 0 : i32
    return %c0_i32, %c0_i32_0 : i32, i32
  }
  func.func @transform_4(%arg0: i32) -> (i32, i32) {
    %c0_i32 = arith.constant 0 : i32
    %c0_i32_0 = arith.constant 0 : i32
    %c0_i32_1 = arith.constant 0 : i32
    return %c0_i32, %c0_i32_0 : i32, i32
  }
  func.func @transform_5(%arg0: i32) -> (i32, i32) {
    %c0_i32 = arith.constant 0 : i32
    %c0_i32_0 = arith.constant 0 : i32
    return %arg0, %c0_i32 : i32, i32
  }
}

</mosaic_0001>

<llo_original>
// kernel: _mlp_proj_impl.1
$region0: #{_mlp_proj_impl.1}
  #allocation0 [shape = 'u32[]', space=smem, size = 0x4, offset = 0x4, fixed_abs, tag = 'smem constant byte address 0x4 - core index']
  #allocation1 [shape = 'u32[144,128]{1,0:T(1,128)}', space=vmem, size = 0x12000, scoped, tag = 'internal scratch']
  %s0 = inlined_call_operand.vmem [shape: f32[16,256], index: 0, kind: input, shape index: {}]
  %s1 = inlined_call_operand.vmem [shape: f32[3,256], index: 1, kind: input, shape index: {}]
  %s2 = inlined_call_operand.vmem [shape: bf16[256,256], index: 2, kind: input, shape index: {}]
  %s3 = inlined_call_operand.vmem [shape: bf16[256,128], index: 3, kind: input, shape index: {}]
  %s4 = inlined_call_operand.vmem [shape: f32[3,128], index: 4, kind: input, shape index: {}]
  %s5 = inlined_call_operand.hbm [shape: f32[16,128], index: 5, kind: output, shape index: {}]
  %s6 = sld [smem:[#allocation0]]
  $region30: #{_mlp_proj_impl.1} parent=0
    _
  %s8 = ssub.s32 1, %s6
  %s9 = scalar_select 0, %s8, %s6
  $region1: #{_mlp_proj_impl.1} parent=0
    #allocation2 [shape = 'u8[8192]{0}', space=vmem, size = 0x2000, scoped, tag = 'output window, operand 0, single buffered']
    #allocation3 [shape = 's32[1]{0}', space=sflag, size = 0x4, scoped, tag = 'scoped memory for _mlp_proj_impl.1']
    %10 = vsyncpa [#allocation3], 0
    // Predicated region
    $region2: #{_mlp_proj_impl.1} parent=1 // pred_check
      _
    $region3: #{_mlp_proj_impl.1} parent=1 // pred_check_branch
      %12 = sbr.rel (0) target = $region5
    $region4: #{_mlp_proj_impl.1} parent=1 // pred_region
      _
    $region5: #{_mlp_proj_impl.1} parent=1 // pred_fallthru
      _
    // Predicated region
    $region6: #{_mlp_proj_impl.1} parent=1 // pred_check
      _
    $region7: #{_mlp_proj_impl.1} parent=1 // pred_check_branch
      %14 = sbr.rel (0) target = $region9
    $region8: #{_mlp_proj_impl.1} parent=1 // pred_region
      _
    $region9: #{_mlp_proj_impl.1} parent=1 // pred_fallthru
      _
    // Predicated region
    $region10: #{_mlp_proj_impl.1} parent=1 // pred_check
      _
    $region11: #{_mlp_proj_impl.1} parent=1 // pred_check_branch
      %16 = sbr.rel (0) target = $region13
    $region12: #{_mlp_proj_impl.1} parent=1 // pred_region
      _
    $region13: #{_mlp_proj_impl.1} parent=1 // pred_fallthru
      _
    // Predicated region
    $region14: #{_mlp_proj_impl.1} parent=1 // pred_check
      _
    $region15: #{_mlp_proj_impl.1} parent=1 // pred_check_branch
      %18 = sbr.rel (0) target = $region17
    $region16: #{_mlp_proj_impl.1} parent=1 // pred_region
      _
    $region17: #{_mlp_proj_impl.1} parent=1 // pred_fallthru
      _
    // Predicated region
    $region18: #{_mlp_proj_impl.1} parent=1 // pred_check
      _
    $region19: #{_mlp_proj_impl.1} parent=1 // pred_check_branch
      %20 = sbr.rel (0) target = $region21
    $region20: #{_mlp_proj_impl.1} parent=1 // pred_region
      _
    $region21: #{_mlp_proj_impl.1} parent=1 // pred_fallthru
      _
    %v22 = vld [vmem:[%s1] ss:$4 sm:$0x3]
    %s23 = scalar_lea.vmem %s1, 1
    %v24 = vld [vmem:[%s23] ss:$4 sm:$0x3]
    %s25 = scalar_lea.vmem %s1, 2
    %v26 = vld [vmem:[%s25] ss:$4 sm:$0x3]
    %v27 = vld [vmem:[%s4] sm:$0x1]
    %v28 = vld [vmem:[%s4 + $0x1] sm:$0x1]
    %v29 = vld [vmem:[%s4 + $0x2] sm:$0x1]
    %v30 = vld [vmem:[%s0] sm:$0xff]
    %v31 = vld [vmem:[%s0 + $0x8] sm:$0xff]
    %v32 = vld [vmem:[%s0 + $0x10] sm:$0xff]
    %v33 = vld [vmem:[%s0 + $0x18] sm:$0xff]
    %v34 = vadd.f32 %v30, %v31
    %35 = vadd.xlane.f32.xlu0 %v34
    %v36 = vpop.xlane.xlu0 %35
    %v37 = vadd.f32 %v32, %v33
    %38 = vadd.xlane.f32.xlu0 %v37
    %v39 = vpop.xlane.xlu0 %38
    %v40 = vrcp.pop 256.0
    %v41 = vmul.f32 %v36, %v40
    %v42 = vmul.f32 %v39, %v40
    %v43 = vmul.f32 %v30, %v30
    %v44 = vmul.f32 %v31, %v31
    %v45 = vmul.f32 %v32, %v32
    %v46 = vmul.f32 %v33, %v33
    %v47 = vadd.f32 %v43, %v44
    %48 = vadd.xlane.f32.xlu0 %v47
    %v49 = vpop.xlane.xlu0 %48
    %v50 = vadd.f32 %v45, %v46
    %51 = vadd.xlane.f32.xlu0 %v50
    %v52 = vpop.xlane.xlu0 %51
    %v53 = vmul.f32 %v49, %v40
    %v54 = vmul.f32 %v52, %v40
    %v55 = vmul.f32 %v41, %v41
    %v56 = vmul.f32 %v42, %v42
    %v57 = vsub.f32 %v53, %v55
    %v58 = vsub.f32 %v54, %v56
    %v59 = vmax.f32 %v57, 0.0
    %v60 = vmax.f32 %v58, 0.0
    %v61 = vsub.f32 %v30, %v41
    %v62 = vsub.f32 %v31, %v41
    %v63 = vsub.f32 %v32, %v42
    %v64 = vsub.f32 %v33, %v42
    %v65 = vadd.f32 %v59, 1e-05
    %v66 = vadd.f32 %v60, 1e-05
    %v67 = vrsqrt.pop %v65
    %v68 = vrsqrt.pop %v66
    %v69 = vmul.f32 %v61, %v67
    %v70 = vmul.f32 %v62, %v67
    %v71 = vmul.f32 %v63, %v68
    %v72 = vmul.f32 %v64, %v68
    %v74 = vlaneseq
    %v75 = vshrl.u32 %v74, 7
    %v76 = vsub.s32 0, %v75
    %v77 = vrot.slane %v22, %v76
    %v78 = vlaneseq
    %v79 = vshrl.u32 %v78, 7
    %v80 = vsub.s32 1, %v79
    %v81 = vrot.slane %v22, %v80
    %v84 = vmul.f32 %v69, %v77
    %v85 = vmul.f32 %v70, %v81
    %v86 = vmul.f32 %v71, %v77
    %v87 = vmul.f32 %v72, %v81
    %v89 = vlaneseq
    %v90 = vshrl.u32 %v89, 7
    %v91 = vsub.s32 0, %v90
    %v92 = vrot.slane %v24, %v91
    %v93 = vlaneseq
    %v94 = vshrl.u32 %v93, 7
    %v95 = vsub.s32 1, %v94
    %v96 = vrot.slane %v24, %v95
    %v99 = vadd.f32 %v84, %v92
    %v100 = vadd.f32 %v85, %v96
    %v101 = vadd.f32 %v86, %v92
    %v102 = vadd.f32 %v87, %v96
    %v103 = vpack.c.bf16 %v101, %v99
    %v104 = vpack.c.bf16 %v102, %v100
    %v105 = vld [vmem:[%s2] sm:$0xff]
    %v106 = vld [vmem:[%s2 + $0x8] sm:$0xff]
    %v107 = vld [vmem:[%s2 + $0x10] sm:$0xff]
    %v108 = vld [vmem:[%s2 + $0x18] sm:$0xff]
    %v109 = vld [vmem:[%s2 + $0x20] sm:$0xff]
    %v110 = vld [vmem:[%s2 + $0x28] sm:$0xff]
    %v111 = vld [vmem:[%s2 + $0x30] sm:$0xff]
    %v112 = vld [vmem:[%s2 + $0x38] sm:$0xff]
    %v113 = vld [vmem:[%s2 + $0x40] sm:$0xff]
    %v114 = vld [vmem:[%s2 + $0x48] sm:$0xff]
    %v115 = vld [vmem:[%s2 + $0x50] sm:$0xff]
    %v116 = vld [vmem:[%s2 + $0x58] sm:$0xff]
    %v117 = vld [vmem:[%s2 + $0x60] sm:$0xff]
    %v118 = vld [vmem:[%s2 + $0x68] sm:$0xff]
    %v119 = vld [vmem:[%s2 + $0x70] sm:$0xff]
    %v120 = vld [vmem:[%s2 + $0x78] sm:$0xff]
    %v121 = vld [vmem:[%s2 + $0x80] sm:$0xff]
    %v122 = vld [vmem:[%s2 + $0x88] sm:$0xff]
    %v123 = vld [vmem:[%s2 + $0x90] sm:$0xff]
    %v124 = vld [vmem:[%s2 + $0x98] sm:$0xff]
    %v125 = vld [vmem:[%s2 + $0xa0] sm:$0xff]
    %v126 = vld [vmem:[%s2 + $0xa8] sm:$0xff]
    %v127 = vld [vmem:[%s2 + $0xb0] sm:$0xff]
    %v128 = vld [vmem:[%s2 + $0xb8] sm:$0xff]
    %v129 = vld [vmem:[%s2 + $0xc0] sm:$0xff]
    %v130 = vld [vmem:[%s2 + $0xc8] sm:$0xff]
    %v131 = vld [vmem:[%s2 + $0xd0] sm:$0xff]
    %v132 = vld [vmem:[%s2 + $0xd8] sm:$0xff]
    %v133 = vld [vmem:[%s2 + $0xe0] sm:$0xff]
    %v134 = vld [vmem:[%s2 + $0xe8] sm:$0xff]
    %v135 = vld [vmem:[%s2 + $0xf0] sm:$0xff]
    %v136 = vld [vmem:[%s2 + $0xf8] sm:$0xff]
    %v138 = vlaneseq
    %v139 = vshrl.u32 %v138, 7
    %v140 = vsub.s32 0, %v139
    %v141 = vrot.slane %v26, %v140
    %v142 = vlaneseq
    %v143 = vshrl.u32 %v142, 7
    %v144 = vsub.s32 1, %v143
    %v145 = vrot.slane %v26, %v144
    %v180 = vunpack.c.l.b16 %v105
    %v181 = vunpack.c.h.b16 %v105
    %v182 = vunpack.c.l.b16 %v106
    %v183 = vunpack.c.h.b16 %v106
    %v184 = vunpack.c.l.b16 %v107
    %v185 = vunpack.c.h.b16 %v107
    %v186 = vunpack.c.l.b16 %v108
    %v187 = vunpack.c.h.b16 %v108
    %v188 = vunpack.c.l.b16 %v109
    %v189 = vunpack.c.h.b16 %v109
    %v190 = vunpack.c.l.b16 %v110
    %v191 = vunpack.c.h.b16 %v110
    %v192 = vunpack.c.l.b16 %v111
    %v193 = vunpack.c.h.b16 %v111
    %v194 = vunpack.c.l.b16 %v112
    %v195 = vunpack.c.h.b16 %v112
    %v196 = vunpack.c.l.b16 %v113
    %v197 = vunpack.c.h.b16 %v113
    %v198 = vunpack.c.l.b16 %v114
    %v199 = vunpack.c.h.b16 %v114
    %v200 = vunpack.c.l.b16 %v115
    %v201 = vunpack.c.h.b16 %v115
    %v202 = vunpack.c.l.b16 %v116
    %v203 = vunpack.c.h.b16 %v116
    %v204 = vunpack.c.l.b16 %v117
    %v205 = vunpack.c.h.b16 %v117
    %v206 = vunpack.c.l.b16 %v118
    %v207 = vunpack.c.h.b16 %v118
    %v208 = vunpack.c.l.b16 %v119
    %v209 = vunpack.c.h.b16 %v119
    %v210 = vunpack.c.l.b16 %v120
    %v211 = vunpack.c.h.b16 %v120
    %v212 = vunpack.c.l.b16 %v121
    %v213 = vunpack.c.h.b16 %v121
    %v214 = vunpack.c.l.b16 %v122
    %v215 = vunpack.c.h.b16 %v122
    %v216 = vunpack.c.l.b16 %v123
    %v217 = vunpack.c.h.b16 %v123
    %v218 = vunpack.c.l.b16 %v124
    %v219 = vunpack.c.h.b16 %v124
    %v220 = vunpack.c.l.b16 %v125
    %v221 = vunpack.c.h.b16 %v125
    %v222 = vunpack.c.l.b16 %v126
    %v223 = vunpack.c.h.b16 %v126
    %v224 = vunpack.c.l.b16 %v127
    %v225 = vunpack.c.h.b16 %v127
    %v226 = vunpack.c.l.b16 %v128
    %v227 = vunpack.c.h.b16 %v128
    %v228 = vunpack.c.l.b16 %v129
    %v229 = vunpack.c.h.b16 %v129
    %v230 = vunpack.c.l.b16 %v130
    %v231 = vunpack.c.h.b16 %v130
    %v232 = vunpack.c.l.b16 %v131
    %v233 = vunpack.c.h.b16 %v131
    %v234 = vunpack.c.l.b16 %v132
    %v235 = vunpack.c.h.b16 %v132
    %v236 = vunpack.c.l.b16 %v133
    %v237 = vunpack.c.h.b16 %v133
    %v238 = vunpack.c.l.b16 %v134
    %v239 = vunpack.c.h.b16 %v134
    %v240 = vunpack.c.l.b16 %v135
    %v241 = vunpack.c.h.b16 %v135
    %v242 = vunpack.c.l.b16 %v136
    %v243 = vunpack.c.h.b16 %v136
    %v244 = vpack.c.b16 %v182, %v180
    %v245 = vpack.c.b16 %v183, %v181
    %v246 = vpack.c.b16 %v186, %v184
    %v247 = vpack.c.b16 %v187, %v185
    %v248 = vpack.c.b16 %v190, %v188
    %v249 = vpack.c.b16 %v191, %v189
    %v250 = vpack.c.b16 %v194, %v192
    %v251 = vpack.c.b16 %v195, %v193
    %v252 = vpack.c.b16 %v198, %v196
    %v253 = vpack.c.b16 %v199, %v197
    %v254 = vpack.c.b16 %v202, %v200
    %v255 = vpack.c.b16 %v203, %v201
    %v256 = vpack.c.b16 %v206, %v204
    %v257 = vpack.c.b16 %v207, %v205
    %v258 = vpack.c.b16 %v210, %v208
    %v259 = vpack.c.b16 %v211, %v209
    %v260 = vpack.c.b16 %v214, %v212
    %v261 = vpack.c.b16 %v215, %v213
    %v262 = vpack.c.b16 %v218, %v216
    %v263 = vpack.c.b16 %v219, %v217
    %v264 = vpack.c.b16 %v222, %v220
    %v265 = vpack.c.b16 %v223, %v221
    %v266 = vpack.c.b16 %v226, %v224
    %v267 = vpack.c.b16 %v227, %v225
    %v268 = vpack.c.b16 %v230, %v228
    %v269 = vpack.c.b16 %v231, %v229
    %v270 = vpack.c.b16 %v234, %v232
    %v271 = vpack.c.b16 %v235, %v233
    %v272 = vpack.c.b16 %v238, %v236
    %v273 = vpack.c.b16 %v239, %v237
    %v274 = vpack.c.b16 %v242, %v240
    %v275 = vpack.c.b16 %v243, %v241
    %308 = vmatprep.subr.bf16.mxu0 %v245
    %309 = vmatpush1.bf16.msra.mxu0 %v244
    %310 = vmatprep.subr.bf16.mxu0 %v247
    %311 = vmatpush1.bf16.msra.mxu0 %v246
    %312 = vmatprep.subr.bf16.mxu0 %v249
    %313 = vmatpush1.bf16.msra.mxu0 %v248
    %314 = vmatprep.subr.bf16.mxu0 %v251
    %315 = vmatpush1.bf16.msra.mxu0 %v250
    %316 = vmatprep.subr.bf16.mxu0 %v253
    %317 = vmatpush1.bf16.msra.mxu0 %v252
    %318 = vmatprep.subr.bf16.mxu0 %v255
    %319 = vmatpush1.bf16.msra.mxu0 %v254
    %320 = vmatprep.subr.bf16.mxu0 %v257
    %321 = vmatpush1.bf16.msra.mxu0 %v256
    %322 = vmatprep.subr.bf16.mxu0 %v259
    %323 = vmatpush1.bf16.msra.mxu0 %v258
    %324 = vmatprep.subr.bf16.mxu0 %v261
    %325 = vmatpush1.bf16.msra.mxu0 %v260
    %326 = vmatprep.subr.bf16.mxu0 %v263
    %327 = vmatpush1.bf16.msra.mxu0 %v262
    %328 = vmatprep.subr.bf16.mxu0 %v265
    %329 = vmatpush1.bf16.msra.mxu0 %v264
    %330 = vmatprep.subr.bf16.mxu0 %v267
    %331 = vmatpush1.bf16.msra.mxu0 %v266
    %332 = vmatprep.subr.bf16.mxu0 %v269
    %333 = vmatpush1.bf16.msra.mxu0 %v268
    %334 = vmatprep.subr.bf16.mxu0 %v271
    %335 = vmatpush1.bf16.msra.mxu0 %v270
    %336 = vmatprep.subr.bf16.mxu0 %v273
    %337 = vmatpush1.bf16.msra.mxu0 %v272
    %338 = vmatprep.subr.bf16.mxu0 %v275
    %339 = vmatpush1.bf16.msra.mxu0 %v274
    %340 = vmatprep.mubr.bf16.mxu0 %v104
    %341 = vmatmul.mubr.bf16.gmra.mrb[0].mxu0 %v103
    %v342 = vpop.f32.mrb[0].mxu0
    %v343 = vadd.f32 %v141, %v342
    %v344 = vpop.f32.mrb[0].mxu0
    %v345 = vadd.f32 %v145, %v344
    %v346 = vpop.f32.mrb[0].mxu0
    %v347 = vadd.f32 %v141, %v346
    %v348 = vpop.f32.mrb[0].mxu0
    %v349 = vadd.f32 %v145, %v348
    %350 = vdwg.mxu0
    %v351 = vmul.f32 %v343, 0.5
    %v352 = vmul.f32 %v345, 0.5
    %v353 = vmul.f32 %v347, 0.5
    %v354 = vmul.f32 %v349, 0.5
    %v355 = vmul.f32 %v343, 0.70710677
    %v356 = vmul.f32 %v345, 0.70710677
    %v357 = vmul.f32 %v347, 0.70710677
    %v358 = vmul.f32 %v349, 0.70710677
    %v359 = verf.f32.pop %v355
    %v360 = verf.f32.pop %v356
    %v361 = verf.f32.pop %v357
    %v362 = verf.f32.pop %v358
    %v363 = vadd.f32 %v359, 1.0
    %v364 = vadd.f32 %v360, 1.0
    %v365 = vadd.f32 %v361, 1.0
    %v366 = vadd.f32 %v362, 1.0
    %v367 = vmul.f32 %v351, %v363
    %v368 = vmul.f32 %v352, %v364
    %v369 = vmul.f32 %v353, %v365
    %v370 = vmul.f32 %v354, %v366
    %v371 = vpack.c.bf16 %v369, %v367
    %v372 = vpack.c.bf16 %v370, %v368
    %v373 = vld [vmem:[%s3] sm:$0xf]
    %v374 = vld [vmem:[%s3 + $0x4] sm:$0xf]
    %v375 = vld [vmem:[%s3 + $0x8] sm:$0xf]
    %v376 = vld [vmem:[%s3 + $0xc] sm:$0xf]
    %v377 = vld [vmem:[%s3 + $0x10] sm:$0xf]
    %v378 = vld [vmem:[%s3 + $0x14] sm:$0xf]
    %v379 = vld [vmem:[%s3 + $0x18] sm:$0xf]
    %v380 = vld [vmem:[%s3 + $0x1c] sm:$0xf]
    %v381 = vld [vmem:[%s3 + $0x20] sm:$0xf]
    %v382 = vld [vmem:[%s3 + $0x24] sm:$0xf]
    %v383 = vld [vmem:[%s3 + $0x28] sm:$0xf]
    %v384 = vld [vmem:[%s3 + $0x2c] sm:$0xf]
    %v385 = vld [vmem:[%s3 + $0x30] sm:$0xf]
    %v386 = vld [vmem:[%s3 + $0x34] sm:$0xf]
    %v387 = vld [vmem:[%s3 + $0x38] sm:$0xf]
    %v388 = vld [vmem:[%s3 + $0x3c] sm:$0xf]
    %v389 = vld [vmem:[%s3 + $0x40] sm:$0xf]
    %v390 = vld [vmem:[%s3 + $0x44] sm:$0xf]
    %v391 = vld [vmem:[%s3 + $0x48] sm:$0xf]
    %v392 = vld [vmem:[%s3 + $0x4c] sm:$0xf]
    %v393 = vld [vmem:[%s3 + $0x50] sm:$0xf]
    %v394 = vld [vmem:[%s3 + $0x54] sm:$0xf]
    %v395 = vld [vmem:[%s3 + $0x58] sm:$0xf]
    %v396 = vld [vmem:[%s3 + $0x5c] sm:$0xf]
    %v397 = vld [vmem:[%s3 + $0x60] sm:$0xf]
    %v398 = vld [vmem:[%s3 + $0x64] sm:$0xf]
    %v399 = vld [vmem:[%s3 + $0x68] sm:$0xf]
    %v400 = vld [vmem:[%s3 + $0x6c] sm:$0xf]
    %v401 = vld [vmem:[%s3 + $0x70] sm:$0xf]
    %v402 = vld [vmem:[%s3 + $0x74] sm:$0xf]
    %v403 = vld [vmem:[%s3 + $0x78] sm:$0xf]
    %v404 = vld [vmem:[%s3 + $0x7c] sm:$0xf]
    %v405 = vlaneseq
    %v406 = vshrl.u32 %v405, 7
    %v407 = vsub.s32 0, %v406
    %v408 = vrot.slane %v27, %v407
    %v441 = vunpack.c.l.b16 %v373
    %v442 = vunpack.c.l.b16 %v374
    %v443 = vunpack.c.l.b16 %v375
    %v444 = vunpack.c.l.b16 %v376
    %v445 = vunpack.c.l.b16 %v377
    %v446 = vunpack.c.l.b16 %v378
    %v447 = vunpack.c.l.b16 %v379
    %v448 = vunpack.c.l.b16 %v380
    %v449 = vunpack.c.l.b16 %v381
    %v450 = vunpack.c.l.b16 %v382
    %v451 = vunpack.c.l.b16 %v383
    %v452 = vunpack.c.l.b16 %v384
    %v453 = vunpack.c.l.b16 %v385
    %v454 = vunpack.c.l.b16 %v386
    %v455 = vunpack.c.l.b16 %v387
    %v456 = vunpack.c.l.b16 %v388
    %v457 = vunpack.c.l.b16 %v389
    %v458 = vunpack.c.l.b16 %v390
    %v459 = vunpack.c.l.b16 %v391
    %v460 = vunpack.c.l.b16 %v392
    %v461 = vunpack.c.l.b16 %v393
    %v462 = vunpack.c.l.b16 %v394
    %v463 = vunpack.c.l.b16 %v395
    %v464 = vunpack.c.l.b16 %v396
    %v465 = vunpack.c.l.b16 %v397
    %v466 = vunpack.c.l.b16 %v398
    %v467 = vunpack.c.l.b16 %v399
    %v468 = vunpack.c.l.b16 %v400
    %v469 = vunpack.c.l.b16 %v401
    %v470 = vunpack.c.l.b16 %v402
    %v471 = vunpack.c.l.b16 %v403
    %v472 = vunpack.c.l.b16 %v404
    %v473 = vpack.c.b16 %v442, %v441
    %v474 = vpack.c.b16 %v444, %v443
    %v475 = vpack.c.b16 %v446, %v445
    %v476 = vpack.c.b16 %v448, %v447
    %v477 = vpack.c.b16 %v450, %v449
    %v478 = vpack.c.b16 %v452, %v451
    %v479 = vpack.c.b16 %v454, %v453
    %v480 = vpack.c.b16 %v456, %v455
    %v481 = vpack.c.b16 %v458, %v457
    %v482 = vpack.c.b16 %v460, %v459
    %v483 = vpack.c.b16 %v462, %v461
    %v484 = vpack.c.b16 %v464, %v463
    %v485 = vpack.c.b16 %v466, %v465
    %v486 = vpack.c.b16 %v468, %v467
    %v487 = vpack.c.b16 %v470, %v469
    %v488 = vpack.c.b16 %v472, %v471
    %505 = vmatprep.subr.bf16.mxu0 0
    %506 = vmatpush1.bf16.msra.mxu0 %v473
    %507 = vmatprep.subr.bf16.mxu0 0
    %508 = vmatpush1.bf16.msra.mxu0 %v474
    %509 = vmatprep.subr.bf16.mxu0 0
    %510 = vmatpush1.bf16.msra.mxu0 %v475
    %511 = vmatprep.subr.bf16.mxu0 0
    %512 = vmatpush1.bf16.msra.mxu0 %v476
    %513 = vmatprep.subr.bf16.mxu0 0
    %514 = vmatpush1.bf16.msra.mxu0 %v477
    %515 = vmatprep.subr.bf16.mxu0 0
    %516 = vmatpush1.bf16.msra.mxu0 %v478
    %517 = vmatprep.subr.bf16.mxu0 0
    %518 = vmatpush1.bf16.msra.mxu0 %v479
    %519 = vmatprep.subr.bf16.mxu0 0
    %520 = vmatpush1.bf16.msra.mxu0 %v480
    %521 = vmatprep.subr.bf16.mxu0 0
    %522 = vmatpush1.bf16.msra.mxu0 %v481
    %523 = vmatprep.subr.bf16.mxu0 0
    %524 = vmatpush1.bf16.msra.mxu0 %v482
    %525 = vmatprep.subr.bf16.mxu0 0
    %526 = vmatpush1.bf16.msra.mxu0 %v483
    %527 = vmatprep.subr.bf16.mxu0 0
    %528 = vmatpush1.bf16.msra.mxu0 %v484
    %529 = vmatprep.subr.bf16.mxu0 0
    %530 = vmatpush1.bf16.msra.mxu0 %v485
    %531 = vmatprep.subr.bf16.mxu0 0
    %532 = vmatpush1.bf16.msra.mxu0 %v486
    %533 = vmatprep.subr.bf16.mxu0 0
    %534 = vmatpush1.bf16.msra.mxu0 %v487
    %535 = vmatprep.subr.bf16.mxu0 0
    %536 = vmatpush1.bf16.msra.mxu0 %v488
    %537 = vmatprep.mubr.bf16.mxu0 %v372
    %538 = vmatmul.mubr.bf16.gmra.mrb[0].mxu0 %v371
    %v539 = vpop.f32.mrb[0].mxu0
    %v540 = vadd.f32 %v408, %v539
    %v541 = vpop.f32.mrb[0].mxu0
    %v542 = vpop.f32.mrb[0].mxu0
    %v543 = vadd.f32 %v408, %v542
    %v544 = vpop.f32.mrb[0].mxu0
    %545 = vdwg.mxu0
    %546 = vadd.xlane.f32.xlu0 %v540
    %v547 = vpop.xlane.xlu0 %546
    %548 = vadd.xlane.f32.xlu0 %v543
    %v549 = vpop.xlane.xlu0 %548
    %v550 = vrcp.pop 128.0
    %v551 = vmul.f32 %v547, %v550
    %v552 = vmul.f32 %v549, %v550
    %v553 = vmul.f32 %v540, %v540
    %v554 = vmul.f32 %v543, %v543
    %555 = vadd.xlane.f32.xlu0 %v553
    %v556 = vpop.xlane.xlu0 %555
    %557 = vadd.xlane.f32.xlu0 %v554
    %v558 = vpop.xlane.xlu0 %557
    %v559 = vmul.f32 %v556, %v550
    %v560 = vmul.f32 %v558, %v550
    %v561 = vmul.f32 %v551, %v551
    %v562 = vmul.f32 %v552, %v552
    %v563 = vsub.f32 %v559, %v561
    %v564 = vsub.f32 %v560, %v562
    %v565 = vmax.f32 %v563, 0.0
    %v566 = vmax.f32 %v564, 0.0
    %v567 = vsub.f32 %v540, %v551
    %v568 = vsub.f32 %v543, %v552
    %v569 = vadd.f32 %v565, 1e-05
    %v570 = vadd.f32 %v566, 1e-05
    %v571 = vrsqrt.pop %v569
    %v572 = vrsqrt.pop %v570
    %v573 = vmul.f32 %v567, %v571
    %v574 = vmul.f32 %v568, %v572
    %v575 = vlaneseq
    %v576 = vshrl.u32 %v575, 7
    %v577 = vsub.s32 0, %v576
    %v578 = vrot.slane %v28, %v577
    %v579 = vmul.f32 %v573, %v578
    %v580 = vmul.f32 %v574, %v578
    %v581 = vlaneseq
    %v582 = vshrl.u32 %v581, 7
    %v583 = vsub.s32 0, %v582
    %v584 = vrot.slane %v29, %v583
    %v585 = vadd.f32 %v579, %v584
    %v586 = vadd.f32 %v580, %v584
    %587 = vst [vmem:[#allocation2] sm:$0xff] %v585
    %588 = vst [vmem:[#allocation2 + $0x8] sm:$0xff] %v586
    // Predicated region
    $region22: #{_mlp_proj_impl.1} parent=1 // pred_check
      _
    $region23: #{_mlp_proj_impl.1} parent=1 // pred_check_branch
      %590 = sbr.rel (0) target = $region25
    $region24: #{_mlp_proj_impl.1} parent=1 // pred_region
      %s592 = ssub.s32 256, 256
      %593 = vsyncadd [#allocation3], %s592
      %s594 = sshll.u32 [#allocation2], 4
      %s595 = int_to_ptr.vmem [resolvable:$true] %s594
      %600 = dma.vmem_to_hbm [thread:$0]  %s595, 256, %s5, [#allocation3], 128, 128, 8
    $region25: #{_mlp_proj_impl.1} parent=1 // pred_fallthru
      _
    // Predicated region
    $region26: #{_mlp_proj_impl.1} parent=1 // pred_check
      _
    $region27: #{_mlp_proj_impl.1} parent=1 // pred_check_branch
      %602 = sbr.rel (0) target = $region29
    $region28: #{_mlp_proj_impl.1} parent=1 // pred_region
      %603 = dma.done [#allocation3], 256
    $region29: #{_mlp_proj_impl.1} parent=1 // pred_fallthru
      _
    %604 = vsyncpa [#allocation3], 1

</llo_original>
